<compile_context>
chip_gen: v7x
topology: tpu7x:2x2x1
jax: 0.10.0
libtpu: 0.0.40
codegen_flags: <defaults>
</compile_context>

<pallas_src>
import functools

import jax
import jax.numpy as jnp
from jax import lax
from jax.experimental import pallas as pl
from jax.experimental.pallas import tpu as pltpu

DEFAULT_WEIGHT = 1.0
_LOG_CLAMP = -100.0            # matches PyTorch BCELoss log clamp
_LANE = 128
_SUBLANE = 8

_CHUNK_ROWS = 512              # reduction sub-chunk: bounds f32 temporaries to
                               # ~6 * 512*128*4B = 1.5 MiB regardless of tile
_MAX_SUM_TILE_ROWS = 8192      # 4 MiB/f32 input block on the reduce path
_MAX_NONE_TILE_ROWS = 4096     # 2 MiB/f32 block ('none' also double-buffers
                               # the output and keeps full-tile temporaries)
_SPLIT_MIN_ROWS = 2048         # once rows >= this, force >=2 grid steps so the
                               # "parallel" axis feeds both v7x TensorCores

# Explicit scoped-VMEM budgets (v5e default scoped limit is only 16 MiB; v7x
# physical VMEM is 64 MiB/TC, so stay comfortably below that).
_SUM_VMEM_LIMIT = 40 << 20     # 2 inputs x 2 bufs x 4 MiB + chunk temps + slack
_NONE_VMEM_LIMIT = 48 << 20    # 2 in x 2 bufs x 2 MiB + 2 out bufs + temps


def _round_up(v, m):
    return ((v + m - 1) // m) * m


def _bce_elementwise(x, y):
    """Per-element BCE with PyTorch's log clamp, computed in f32."""
    xf = x.astype(jnp.float32)
    yf = y.astype(jnp.float32)
    log_x = jnp.maximum(jnp.log(xf), _LOG_CLAMP)
    log_1mx = jnp.maximum(jnp.log(1.0 - xf), _LOG_CLAMP)
    return -(yf * log_x + (1.0 - yf) * log_1mx)


# ----------------------------------------------------------------------------
# Kernels
# ----------------------------------------------------------------------------
def _bce_none_kernel(weight, x_ref, y_ref, o_ref):
    """Elementwise loss with the weight multiply fused in-kernel."""
    loss = _bce_elementwise(x_ref[...], y_ref[...])
    if weight != 1.0:
        loss = weight * loss
    o_ref[...] = loss.astype(o_ref.dtype)


def _chunk_loss_sum(x, y, elem_idx, n_valid):
    """Fold one (chunk_rows,128) chunk into an (8,128) f32 partial sum.

    The (C,128)->(C/8,8,128) reshape preserves the vreg layout; the axis-0 sum
    is pure VPU vreg adds (no XLU cross-lane reduce, no masked scalar store).
    """
    loss = _bce_elementwise(x, y)
    if n_valid is not None:
        loss = jnp.where(elem_idx < n_valid, loss, 0.0)   # zero out tail/OOB
    return loss.reshape(-1, _SUBLANE, _LANE).sum(axis=0)


def _tile_sum(x_ref, y_ref, tile_rows, chunk_rows, n_valid):
    """Sum BCE over this tile into a single (8,128) f32 vreg.

    Processes the tile in (chunk_rows, 128) sub-chunks with a fori_loop so the
    live f32 temporaries stay bounded even for multi-MiB tiles.
    """
    n_chunks = tile_rows // chunk_rows
    elem0 = None
    if n_valid is not None:
        base = pl.program_id(0) * (tile_rows * _LANE)
        row = lax.broadcasted_iota(jnp.int32, (chunk_rows, _LANE), 0)
        lane = lax.broadcasted_iota(jnp.int32, (chunk_rows, _LANE), 1)
        elem0 = base + row * _LANE + lane        # element ids of chunk 0 (hoisted)

    if n_chunks == 1:
        return _chunk_loss_sum(x_ref[...], y_ref[...], elem0, n_valid)

    def body(c, acc):
        r0 = pl.multiple_of(c * chunk_rows, chunk_rows)
        idx = None if n_valid is None else elem0 + c * (chunk_rows * _LANE)
        return acc + _chunk_loss_sum(x_ref[pl.ds(r0, chunk_rows), :],
                                     y_ref[pl.ds(r0, chunk_rows), :],
                                     idx, n_valid)

    return lax.fori_loop(0, n_chunks, body,
                         jnp.zeros((_SUBLANE, _LANE), jnp.float32))


def _bce_tile_sum_kernel(tile_rows, chunk_rows, n_valid, x_ref, y_ref, o_ref):
    """Multi-block path: one (8,128) partial-sum block per grid step."""
    o_ref[...] = _tile_sum(x_ref, y_ref, tile_rows, chunk_rows, n_valid)


def _bce_scalar_sum_kernel(tile_rows, chunk_rows, n_valid, scale,
                           x_ref, y_ref, o_ref):
    """Single-block path: full reduce + weight/mean scaling done in-kernel."""
    acc = _tile_sum(x_ref, y_ref, tile_rows, chunk_rows, n_valid)
    total = jnp.sum(acc)                 # one XLU cross-lane reduce
    if scale != 1.0:
        total = total * scale
    o_ref[...] = total.reshape(1, 1).astype(o_ref.dtype)


# ----------------------------------------------------------------------------
# Wrapper
# ----------------------------------------------------------------------------
def _pick_tile_rows(rows, max_tile_rows, quantum):
    """Tile rows: a multiple of `quantum`, capped at `max_tile_rows`, chosen so
    inputs with >= _SPLIT_MIN_ROWS rows get at least 2 grid steps (v7x)."""
    rows_q = _round_up(rows, quantum)
    if rows >= _SPLIT_MIN_ROWS:
        t = _round_up(pl.cdiv(rows, 2), quantum)
    else:
        t = rows_q
    return min(t, max_tile_rows, rows_q)


def _to_slab(x, y):
    """Flatten to (rows, 128). Only pads (zero-loss x=y=1) when x.size % 128 != 0."""
    n = x.size
    flat_x = x.reshape(-1)
    flat_y = y.reshape(-1)
    n_pad = _round_up(n, _LANE)
    if n_pad != n:
        # TODO(synk): a tail-only kernel pass would avoid this full HBM copy;
        # it only triggers when x.size isn't a multiple of 128.
        flat_x = jnp.concatenate(
            [flat_x, jnp.full((n_pad - n,), 1.0, dtype=flat_x.dtype)])
        flat_y = jnp.concatenate(
            [flat_y, jnp.full((n_pad - n,), 1.0, dtype=flat_y.dtype)])
    rows = n_pad // _LANE
    return flat_x.reshape(rows, _LANE), flat_y.reshape(rows, _LANE), n_pad != n


@functools.partial(jax.jit, static_argnames=("weight", "reduction"))
def bce_loss(x, y, weight: float = DEFAULT_WEIGHT, reduction: str = "mean"):
    """Pallas implementation of BCELoss.forward (weight * nn.BCELoss(reduction))."""
    if weight < 0:
        raise ValueError(f"weight must be non-negative, got {weight}")
    if reduction not in ("none", "mean", "sum"):
        raise ValueError(f"Invalid reduction mode: {reduction}")
    assert x.shape == y.shape, f"Shape mismatch: x={x.shape}, y={y.shape}"
    # TODO(synk): PyTorch's runtime check that x is in [0, 1] is a
    # data-dependent raise with no clean jit equivalent; the -100 log clamp
    # keeps the math finite, but out-of-range / NaN inputs propagate NaN.
    n_elems = x.size

    xs, ys, lane_padded = _to_slab(x, y)
    rows = xs.shape[0]

    if reduction == "none":
        tile_rows = _pick_tile_rows(rows, _MAX_NONE_TILE_ROWS, _SUBLANE)
        grid_n = pl.cdiv(rows, tile_rows)
        spec = pl.BlockSpec((tile_rows, _LANE), lambda i: (i, 0))
        out = pl.pallas_call(
            functools.partial(_bce_none_kernel, float(weight)),
            out_shape=jax.ShapeDtypeStruct((rows, _LANE), x.dtype),
            grid=(grid_n,),
            in_specs=[spec, spec],
            out_specs=spec,
            compiler_params=pltpu.CompilerParams(
                dimension_semantics=("parallel",),
                vmem_limit_bytes=_NONE_VMEM_LIMIT),
        )(xs, ys)
        if lane_padded:
            out = out.reshape(-1)[:n_elems]
        return out.reshape(x.shape)

    # 'mean' / 'sum'
    quantum = _CHUNK_ROWS if rows > _CHUNK_ROWS else _SUBLANE
    tile_rows = _pick_tile_rows(rows, _MAX_SUM_TILE_ROWS, quantum)
    grid_n = pl.cdiv(rows, tile_rows)
    chunk_rows = min(tile_rows, _CHUNK_ROWS)
    # Mask only when the grid covers more slab elements than are valid
    # (lane padding and/or a partial last block). Static decision.
    mask_needed = grid_n * tile_rows * _LANE != n_elems
    n_valid = n_elems if mask_needed else None
    scale = float(weight) / n_elems if reduction == "mean" else float(weight)
    in_spec = pl.BlockSpec((tile_rows, _LANE), lambda i: (i, 0))

    if grid_n == 1:
        # Small input: fold the final cross-lane reduce + scaling into the
        # kernel; a single (1,1) result comes back (no second XLA reduce).
        out = pl.pallas_call(
            functools.partial(_bce_scalar_sum_kernel, tile_rows, chunk_rows,
                              n_valid, scale),
            out_shape=jax.ShapeDtypeStruct((1, 1), jnp.float32),
            grid=(1,),
            in_specs=[in_spec, in_spec],
            out_specs=pl.BlockSpec((1, 1), lambda i: (0, 0)),
            compiler_params=pltpu.CompilerParams(
                dimension_semantics=("arbitrary",),
                vmem_limit_bytes=_SUM_VMEM_LIMIT),
        )(xs, ys)
        return out.reshape(()).astype(x.dtype)

    # Large input: one (8,128) VPU-only partial-sum block per grid step;
    # "parallel" axis shards the steps across v7x's two TensorCores. The
    # final reduce touches only grid_n*1024 f32 values.
    partials = pl.pallas_call(
        functools.partial(_bce_tile_sum_kernel, tile_rows, chunk_rows, n_valid),
        out_shape=jax.ShapeDtypeStruct((grid_n * _SUBLANE, _LANE), jnp.float32),
        grid=(grid_n,),
        in_specs=[in_spec, in_spec],
        out_specs=pl.BlockSpec((_SUBLANE, _LANE), lambda i: (i, 0)),
        compiler_params=pltpu.CompilerParams(
            dimension_semantics=("parallel",),
            vmem_limit_bytes=_SUM_VMEM_LIMIT),
    )(xs, ys)
    return (jnp.sum(partials) * scale).astype(x.dtype)


# ----------------------------------------------------------------------------
# Reference + self-test
# ----------------------------------------------------------------------------
def _reference_bce(x, y, weight=DEFAULT_WEIGHT, reduction="mean"):
    loss = _bce_elementwise(x, y)
    if reduction == "mean":
        loss = jnp.mean(loss)
    elif reduction == "sum":
        loss = jnp.sum(loss)
    return weight * loss


if __name__ == "__main__":
    key = jax.random.PRNGKey(0)
    kx, ky = jax.random.split(key)
    shape = (2, 4, 16, 16)
    # Predicted probabilities in [0, 1], binary labels in {0, 1}.
    x = jax.random.uniform(kx, shape, dtype=jnp.float32)
    y = (jax.random.uniform(ky, shape) > 0.5).astype(jnp.float32)

    out = bce_loss(x, y, weight=DEFAULT_WEIGHT, reduction="mean")
    jax.block_until_ready(out)
    assert jnp.allclose(out, _reference_bce(x, y), rtol=1e-5, atol=1e-5), out

    out_sum = bce_loss(x, y, reduction="sum")
    jax.block_until_ready(out_sum)
    assert jnp.allclose(out_sum, _reference_bce(x, y, reduction="sum"),
                        rtol=1e-5, atol=1e-4)

    out_none = bce_loss(x, y, reduction="none")
    jax.block_until_ready(out_none)
    assert jnp.allclose(out_none, _reference_bce(x, y, reduction="none"),
                        rtol=1e-5, atol=1e-5)

    # Exercise the lane-pad / tail-mask / chunked-reduce / multi-block paths.
    extra_cases = [
        ((3, 5, 7, 11), ("mean", "sum", "none")),  # 1155 elems: lane pad + mask
        ((1, 5, 128, 128), ("sum",)),              # 640 rows: chunked, masked tile
        ((8, 8, 64, 64), ("mean",)),               # 2048 rows: 2 parallel blocks
    ]
    for case_i, (shp, reds) in enumerate(extra_cases):
        kxa, kya = jax.random.split(jax.random.PRNGKey(case_i + 1))
        xa = jax.random.uniform(kxa, shp, dtype=jnp.float32)
        ya = (jax.random.uniform(kya, shp) > 0.5).astype(jnp.float32)
        for red in reds:
            got = bce_loss(xa, ya, weight=0.5, reduction=red)
            jax.block_until_ready(got)
            ref = _reference_bce(xa, ya, weight=0.5, reduction=red)
            assert jnp.allclose(got, ref, rtol=1e-4, atol=1e-4), (shp, red)

    print("KERNEL_OK")
</pallas_src>

<mosaic_0001>
module attributes {stable_mosaic.version = 11 : i64} {
  func.func @_bce_scalar_sum_kernel(%arg0: i32, %arg1: memref<16x128xf32, #tpu.memory_space<vmem>>, %arg2: memref<16x128xf32, #tpu.memory_space<vmem>>, %arg3: memref<1x1xf32, #tpu.memory_space<vmem>>) attributes {dimension_semantics = [#tpu.dimension_semantics<arbitrary>], iteration_bounds = array<i64: 1>, scalar_prefetch = 0 : i64, scratch_operands = 0 : i64, tpu.core_type = #tpu.core_type<tc>, window_params = [{transform_indices = @transform_0, window_bounds = array<i64: 16, 128>}, {transform_indices = @transform_1, window_bounds = array<i64: 16, 128>}, {pipeline_mode = #tpu.pipeline_mode<synchronous>, transform_indices = @transform_2, window_bounds = array<i64: 1, 1>}]} {
    %c0 = arith.constant 0 : index
    %c0_0 = arith.constant 0 : index
    %0 = vector.load %arg1[%c0, %c0_0] : memref<16x128xf32, #tpu.memory_space<vmem>>, vector<16x128xf32>
    %c0_1 = arith.constant 0 : index
    %c0_2 = arith.constant 0 : index
    %1 = vector.load %arg2[%c0_1, %c0_2] : memref<16x128xf32, #tpu.memory_space<vmem>>, vector<16x128xf32>
    %2 = math.log %0 : vector<16x128xf32>
    %cst = arith.constant -1.000000e+02 : f32
    %3 = vector.broadcast %cst : f32 to vector<16x128xf32>
    %4 = arith.maximumf %2, %3 : vector<16x128xf32>
    %cst_3 = arith.constant 1.000000e+00 : f32
    %5 = vector.broadcast %cst_3 : f32 to vector<16x128xf32>
    %6 = arith.subf %5, %0 : vector<16x128xf32>
    %7 = math.log %6 : vector<16x128xf32>
    %cst_4 = arith.constant -1.000000e+02 : f32
    %8 = vector.broadcast %cst_4 : f32 to vector<16x128xf32>
    %9 = arith.maximumf %7, %8 : vector<16x128xf32>
    %10 = arith.mulf %1, %4 : vector<16x128xf32>
    %cst_5 = arith.constant 1.000000e+00 : f32
    %11 = vector.broadcast %cst_5 : f32 to vector<16x128xf32>
    %12 = arith.subf %11, %1 : vector<16x128xf32>
    %13 = arith.mulf %12, %9 : vector<16x128xf32>
    %14 = arith.addf %10, %13 : vector<16x128xf32>
    %cst_6 = arith.constant 0.000000e+00 : f32
    %15 = vector.broadcast %cst_6 : f32 to vector<16x128xf32>
    %16 = arith.subf %15, %14 : vector<16x128xf32>
    %17 = vector.shape_cast %16 : vector<16x128xf32> to vector<2x8x128xf32>
    %cst_7 = arith.constant dense<0.000000e+00> : vector<8x128xf32>
    %18 = vector.multi_reduction <add>, %17, %cst_7 [0] : vector<2x8x128xf32> to vector<8x128xf32>
    %19 = vector.shape_cast %18 : vector<8x128xf32> to vector<1x8x128xf32>
    %cst_8 = arith.constant dense<0.000000e+00> : vector<1xf32>
    %20 = vector.multi_reduction <add>, %19, %cst_8 [1, 2] : vector<1x8x128xf32> to vector<1xf32>
    %21 = vector.shape_cast %20 : vector<1xf32> to vector<1x1x1xf32>
    %22 = vector.extract %21[0, 0, 0] : f32 from vector<1x1x1xf32>
    %cst_9 = arith.constant 4.8828125E-4 : f32
    %23 = arith.mulf %22, %cst_9 : f32
    %24 = vector.broadcast %23 : f32 to vector<1x1xf32>
    %c0_10 = arith.constant 0 : index
    %c0_11 = arith.constant 0 : index
    %25 = vector.load %arg3[%c0_10, %c0_11] : memref<1x1xf32, #tpu.memory_space<vmem>>, vector<1x1xf32>
    tpu.vector_store %arg3[%c0_10, %c0_11], %24 {strides = array<i32>} : memref<1x1xf32, #tpu.memory_space<vmem>>, vector<1x1xf32>,
    return
  }
  func.func @transform_0(%arg0: i32) -> (i32, i32) {
    %c0_i32 = arith.constant 0 : i32
    %c0_i32_0 = arith.constant 0 : i32
    return %arg0, %c0_i32 : i32, i32
  }
  func.func @transform_1(%arg0: i32) -> (i32, i32) {
    %c0_i32 = arith.constant 0 : i32
    %c0_i32_0 = arith.constant 0 : i32
    return %arg0, %c0_i32 : i32, i32
  }
  func.func @transform_2(%arg0: i32) -> (i32, i32) {
    %c0_i32 = arith.constant 0 : i32
    %c0_i32_0 = arith.constant 0 : i32
    %c0_i32_1 = arith.constant 0 : i32
    return %c0_i32, %c0_i32_0 : i32, i32
  }
}

</mosaic_0001>

<llo_original>
// kernel: bce_loss.1
$region0: #{bce_loss.1}
  #allocation0 [shape = 'u32[]', space=smem, size = 0x4, offset = 0x4, fixed_abs, tag = 'smem constant byte address 0x4 - core index']
  #allocation1 [shape = 'u32[144,128]{1,0:T(1,128)}', space=vmem, size = 0x12000, scoped, tag = 'internal scratch']
  %s0 = inlined_call_operand.vmem [shape: f32[16,128], index: 0, kind: input, shape index: {}]
  %s1 = inlined_call_operand.vmem [shape: f32[16,128], index: 1, kind: input, shape index: {}]
  %s2 = inlined_call_operand.hbm [shape: f32[1,1], index: 2, kind: output, shape index: {}]
  %s3 = sld [smem:[#allocation0]]
  $region18: #{bce_loss.1} parent=0
    _
  %s5 = ssub.s32 1, %s3
  %s6 = scalar_select 0, %s5, %s3
  $region1: #{bce_loss.1} parent=0
    #allocation2 [shape = 'u8[512]{0}', space=vmem, size = 0x400, scoped, tag = 'output window, operand 0, single buffered']
    #allocation3 [shape = 's32[1]{0}', space=sflag, size = 0x4, scoped, tag = 'scoped memory for bce_loss.1']
    %7 = vsyncpa [#allocation3], 0
    // Predicated region
    $region2: #{bce_loss.1} parent=1 // pred_check
      _
    $region3: #{bce_loss.1} parent=1 // pred_check_branch
      %9 = sbr.rel (0) target = $region5
    $region4: #{bce_loss.1} parent=1 // pred_region
      _
    $region5: #{bce_loss.1} parent=1 // pred_fallthru
      _
    // Predicated region
    $region6: #{bce_loss.1} parent=1 // pred_check
      _
    $region7: #{bce_loss.1} parent=1 // pred_check_branch
      %11 = sbr.rel (0) target = $region9
    $region8: #{bce_loss.1} parent=1 // pred_region
      _
    $region9: #{bce_loss.1} parent=1 // pred_fallthru
      _
    %v12 = vld [vmem:[%s0] sm:$0xff]
    %v13 = vld [vmem:[%s0 + $0x8] sm:$0xff]
    %v14 = vld [vmem:[%s1] sm:$0xff]
    %v15 = vld [vmem:[%s1 + $0x8] sm:$0xff]
    %v16 = vlog2.pop %v12
    %v17 = vmul.f32 %v16, 0.6931472
    %v18 = vlog2.pop %v13
    %v19 = vmul.f32 %v18, 0.6931472
    %v20 = vmax.f32 %v17, -100.0
    %v21 = vmax.f32 %v19, -100.0
    %v22 = vsub.f32 1.0, %v12
    %v23 = vsub.f32 1.0, %v13
    %v24 = vlog2.pop %v22
    %v25 = vmul.f32 %v24, 0.6931472
    %v26 = vlog2.pop %v23
    %v27 = vmul.f32 %v26, 0.6931472
    %v28 = vmax.f32 %v25, -100.0
    %v29 = vmax.f32 %v27, -100.0
    %v30 = vmul.f32 %v14, %v20
    %v31 = vmul.f32 %v15, %v21
    %v32 = vsub.f32 1.0, %v14
    %v33 = vsub.f32 1.0, %v15
    %v34 = vmul.f32 %v32, %v28
    %v35 = vmul.f32 %v33, %v29
    %v36 = vadd.f32 %v30, %v34
    %v37 = vadd.f32 %v31, %v35
    %v38 = vsub.f32 0.0, %v36
    %v39 = vsub.f32 0.0, %v37
    %v40 = vadd.f32 %v38, %v39
    %41 = vadd.xlane.f32.xlu0 %v40
    %v42 = vpop.xlane.xlu0 %41
    %v43 = vrot.slane %v42, 4
    %v44 = vadd.f32 %v42, %v43
    %v45 = vrot.slane %v44, 2
    %v46 = vadd.f32 %v44, %v45
    %v47 = vrot.slane %v46, 1
    %v48 = vadd.f32 %v46, %v47
    %s49 = vtos %v48
    %s50 = smul.f32 %s49, 0.00048828125
    %v51 = vstv %s50
    %vm52 = vcmask 0
    %53 = vst.msk [vmem:[#allocation2] sm:$0x1] %vm52, %v51
    // Predicated region
    $region10: #{bce_loss.1} parent=1 // pred_check
      _
    $region11: #{bce_loss.1} parent=1 // pred_check_branch
      %55 = sbr.rel (0) target = $region13
    $region12: #{bce_loss.1} parent=1 // pred_region
      %s57 = ssub.s32 16, 16
      %58 = vsyncadd [#allocation3], %s57
      %s60 = sshll.u32 [#allocation2], 4
      %s61 = int_to_ptr.vmem [resolvable:$true] %s60
      %63 = dma.vmem_to_hbm [thread:$0]  %s61, 16, %s2, [#allocation3]
    $region13: #{bce_loss.1} parent=1 // pred_fallthru
      _
    // Predicated region
    $region14: #{bce_loss.1} parent=1 // pred_check
      _
    $region15: #{bce_loss.1} parent=1 // pred_check_branch
      %65 = sbr.rel (0) target = $region17
    $region16: #{bce_loss.1} parent=1 // pred_region
      %66 = dma.done [#allocation3], 16
    $region17: #{bce_loss.1} parent=1 // pred_fallthru
      _
    %67 = vsyncpa [#allocation3], 1

</llo_original>
